<compile_context>
chip_gen: v7x
topology: tpu7x:2x2x1
jax: 0.10.0
libtpu: 0.0.40
codegen_flags: <defaults>
</compile_context>

<pallas_src>
import functools
import math

import jax
import jax.numpy as jnp
from jax import lax
from jax.experimental import pallas as pl
from jax.experimental.pallas import tpu as pltpu


def _round_up(x, m):
    return ((x + m - 1) // m) * m


def _pick_tile(dim, candidates):
    for c in candidates:
        if dim % c == 0:
            return c
    return dim  # fall back to a single full-size block (fine for small dims)


def _maybe_vmem_limit(block_bytes):
    # double-buffered blocks + ~25% headroom; only override when the default
    # scoped VMEM would be too small (never triggers at the toy test shapes).
    need = int(block_bytes * 2.5)
    if need <= 24 * 1024 * 1024:
        return None
    return min(need, 48 * 1024 * 1024)


# --------------------- Stage 1: fused QKV projection ---------------------
def _qkv_proj_kernel(x_ref, w_ref, b_ref, q_ref, k_ref, v_ref, *, hp):
    # x_ref: (TM, H); w_ref: (H, 3*Hp); b_ref: (1, 3*Hp)
    x = x_ref[...]
    qkv = jnp.dot(x, w_ref[...], preferred_element_type=jnp.float32) + b_ref[...]
    q_ref[...] = qkv[:, :hp].astype(q_ref.dtype)
    k_ref[...] = qkv[:, hp:2 * hp].astype(k_ref.dtype)
    v_ref[...] = qkv[:, 2 * hp:].astype(v_ref.dtype)


# --------------------- Stage 2: structured attention ---------------------
def _attention_kernel(q_ref, k_ref, v_ref, ssm_ref, o_ref, *, inv_scale):
    q = q_ref[0]          # (TQ, Hp)
    k = k_ref[0]          # (S,  Hp)
    v = v_ref[0]          # (S,  Hp)
    ssm = ssm_ref[0]      # (TQ, S)

    # Q K^T / scale: contract on the hidden dim directly -> no in-kernel
    # transpose of K (padded hidden columns are zero, so scores are unchanged).
    scores = lax.dot_general(
        q, k, (((1,), (1,)), ((), ())),
        preferred_element_type=jnp.float32) * inv_scale
    masked = scores * ssm.astype(jnp.float32)   # multiplicative structured mask

    # softmax over the key axis, in f32
    m = jnp.max(masked, axis=-1, keepdims=True)
    e = jnp.exp(masked - m)
    denom = jnp.sum(e, axis=-1, keepdims=True)
    weights = e * pl.reciprocal(denom, approx=True)   # EUP vrcp (free slot)

    out = jnp.dot(weights.astype(v.dtype), v, preferred_element_type=jnp.float32)
    o_ref[0] = out.astype(o_ref.dtype)


def learned_structured_attention(x_sbh, ssm, wq, bq, wk, bk, wv, bv,
                                 *, compute_dtype=None):
    """x_sbh: (S, B, H), ssm: (B, S, S). Returns (S, B, H)."""
    S, B, H = x_sbh.shape
    cd = compute_dtype or x_sbh.dtype           # e.g. jnp.bfloat16 on v6e/v7x
    out_dtype = x_sbh.dtype
    Hp = _round_up(H, 128)                      # lane-dense q/k/v/out last dim
    inv_scale = 1.0 / math.sqrt(H)
    cd_size = jnp.dtype(cd).itemsize

    # ---- fuse + pad projection weights: (H, 3*Hp), biases (1, 3*Hp) ----
    def _prep(w, b):
        wt = jnp.pad(w.T.astype(cd), ((0, 0), (0, Hp - H)))        # (H, Hp)
        bp = jnp.pad(b.astype(jnp.float32), (0, Hp - H))           # (Hp,)
        return wt, bp

    wq_t, bq_p = _prep(wq, bq)
    wk_t, bk_p = _prep(wk, bk)
    wv_t, bv_p = _prep(wv, bv)
    w_qkv = jnp.concatenate([wq_t, wk_t, wv_t], axis=1)            # (H, 3*Hp)
    b_qkv = jnp.concatenate([bq_p, bk_p, bv_p])[None, :]           # (1, 3*Hp)

    # ---- Stage 1: QKV projection, batch*seq packed into the MXU M dim ----
    x_bsh = jnp.transpose(x_sbh, (1, 0, 2)).astype(cd)             # (B, S, H)
    x2d = x_bsh.reshape(B * S, H)                                  # free reshape
    M = B * S
    TM = _pick_tile(M, (1024, 512, 256, 128))

    proj_block_bytes = ((TM * H + H * 3 * Hp) * cd_size
                        + 3 * Hp * 4
                        + 3 * TM * Hp * cd_size)
    qkv_shape = jax.ShapeDtypeStruct((M, Hp), cd)
    q2d, k2d, v2d = pl.pallas_call(
        functools.partial(_qkv_proj_kernel, hp=Hp),
        out_shape=(qkv_shape, qkv_shape, qkv_shape),
        grid=(M // TM,),
        in_specs=[
            pl.BlockSpec((TM, H), lambda i: (i, 0)),        # x rows
            pl.BlockSpec((H, 3 * Hp), lambda i: (0, 0)),    # fused W_qkv
            pl.BlockSpec((1, 3 * Hp), lambda i: (0, 0)),    # fused bias
        ],
        out_specs=(
            pl.BlockSpec((TM, Hp), lambda i: (i, 0)),
            pl.BlockSpec((TM, Hp), lambda i: (i, 0)),
            pl.BlockSpec((TM, Hp), lambda i: (i, 0)),
        ),
        compiler_params=pltpu.CompilerParams(
            dimension_semantics=("parallel",),
            vmem_limit_bytes=_maybe_vmem_limit(proj_block_bytes)),
    )(x2d, w_qkv, b_qkv)

    q = q2d.reshape(B, S, Hp)
    k = k2d.reshape(B, S, Hp)
    v = v2d.reshape(B, S, Hp)

    # ---- Stage 2: attention, grid over (batch, query tiles) ----
    TQ = _pick_tile(S, (256, 128))
    attn_block_bytes = ((TQ * Hp + 2 * S * Hp) * cd_size
                        + TQ * S * jnp.dtype(ssm.dtype).itemsize
                        + TQ * Hp * jnp.dtype(out_dtype).itemsize)

    out_padded = pl.pallas_call(
        functools.partial(_attention_kernel, inv_scale=inv_scale),
        out_shape=jax.ShapeDtypeStruct((B, S, Hp), out_dtype),
        grid=(B, S // TQ),
        in_specs=[
            pl.BlockSpec((1, TQ, Hp), lambda b, qi: (b, qi, 0)),   # Q tile
            pl.BlockSpec((1, S, Hp), lambda b, qi: (b, 0, 0)),     # K (full seq)
            pl.BlockSpec((1, S, Hp), lambda b, qi: (b, 0, 0)),     # V (full seq)
            pl.BlockSpec((1, TQ, S), lambda b, qi: (b, qi, 0)),    # ssm tile
        ],
        out_specs=pl.BlockSpec((1, TQ, Hp), lambda b, qi: (b, qi, 0)),
        compiler_params=pltpu.CompilerParams(
            dimension_semantics=("parallel", "parallel"),
            vmem_limit_bytes=_maybe_vmem_limit(attn_block_bytes)),
    )(q, k, v, ssm)

    # (B, S, Hp) -> (S, B, H); the pad-slice fuses into the transpose copy.
    return jnp.transpose(out_padded, (1, 0, 2))[:, :, :H]


def _reference(x_sbh, ssm, wq, bq, wk, bk, wv, bv):
    # Pure-JAX mirror of the PyTorch forward, for correctness check.
    H = x_sbh.shape[-1]
    Q = x_sbh @ wq.T + bq
    K = x_sbh @ wk.T + bk
    V = x_sbh @ wv.T + bv
    Q = jnp.transpose(Q, (1, 0, 2))
    K = jnp.transpose(K, (1, 0, 2))
    V = jnp.transpose(V, (1, 0, 2))
    scores = jnp.einsum("bqh,bkh->bqk", Q, K) / math.sqrt(H)
    masked = scores * ssm
    w = jax.nn.softmax(masked, axis=-1)
    out = jnp.einsum("bqk,bkh->bqh", w, V)
    return jnp.transpose(out, (1, 0, 2))


if __name__ == "__main__":
    S, B, H = 8, 2, 32
    key = jax.random.PRNGKey(0)
    kx, kssm, k1, k2, k3, k4, k5, k6 = jax.random.split(key, 8)

    x = jax.random.normal(kx, (S, B, H), dtype=jnp.float32)
    ssm = jax.random.uniform(kssm, (B, S, S), dtype=jnp.float32)

    # PyTorch Linear layout: weight (out, in), bias (out,)
    bound = 1.0 / math.sqrt(H)
    wq = jax.random.uniform(k1, (H, H), minval=-bound, maxval=bound, dtype=jnp.float32)
    wk = jax.random.uniform(k2, (H, H), minval=-bound, maxval=bound, dtype=jnp.float32)
    wv = jax.random.uniform(k3, (H, H), minval=-bound, maxval=bound, dtype=jnp.float32)
    bq = jax.random.uniform(k4, (H,), minval=-bound, maxval=bound, dtype=jnp.float32)
    bk = jax.random.uniform(k5, (H,), minval=-bound, maxval=bound, dtype=jnp.float32)
    bv = jax.random.uniform(k6, (H,), minval=-bound, maxval=bound, dtype=jnp.float32)

    out = learned_structured_attention(x, ssm, wq, bq, wk, bk, wv, bv)
    out = jax.block_until_ready(out)

    ref = _reference(x, ssm, wq, bq, wk, bk, wv, bv)
    assert out.shape == (S, B, H)
    assert bool(jnp.all(jnp.isfinite(out)))
    # Tolerance accounts for the EUP approximate reciprocal in the softmax
    # (pl.reciprocal(approx=True)); a real logic/layout bug gives O(1) errors.
    assert jnp.allclose(out, ref, atol=2e-3, rtol=2e-3)

    print("KERNEL_OK")
</pallas_src>

<mosaic_0001>
module attributes {stable_mosaic.version = 11 : i64} {
  func.func @_qkv_proj_kernel(%arg0: i32, %arg1: memref<16x32xf32, #tpu.memory_space<vmem>>, %arg2: memref<32x384xf32, #tpu.memory_space<vmem>>, %arg3: memref<1x384xf32, #tpu.memory_space<vmem>>, %arg4: memref<16x128xf32, #tpu.memory_space<vmem>>, %arg5: memref<16x128xf32, #tpu.memory_space<vmem>>, %arg6: memref<16x128xf32, #tpu.memory_space<vmem>>) attributes {dimension_semantics = [#tpu.dimension_semantics<parallel>], iteration_bounds = array<i64: 1>, scalar_prefetch = 0 : i64, scratch_operands = 0 : i64, tpu.core_type = #tpu.core_type<tc>, window_params = [{transform_indices = @transform_0, window_bounds = array<i64: 16, 32>}, {pipeline_mode = #tpu.pipeline_mode<synchronous>, transform_indices = @transform_1, window_bounds = array<i64: 32, 384>}, {pipeline_mode = #tpu.pipeline_mode<synchronous>, transform_indices = @transform_2, window_bounds = array<i64: 1, 384>}, {transform_indices = @transform_3, window_bounds = array<i64: 16, 128>}, {transform_indices = @transform_4, window_bounds = array<i64: 16, 128>}, {transform_indices = @transform_5, window_bounds = array<i64: 16, 128>}]} {
    %c0 = arith.constant 0 : index
    %c0_0 = arith.constant 0 : index
    %0 = vector.load %arg1[%c0, %c0_0] : memref<16x32xf32, #tpu.memory_space<vmem>>, vector<16x32xf32>
    %c0_1 = arith.constant 0 : index
    %c0_2 = arith.constant 0 : index
    %1 = vector.load %arg2[%c0_1, %c0_2] : memref<32x384xf32, #tpu.memory_space<vmem>>, vector<32x384xf32>
    %cst = arith.constant dense<0.000000e+00> : vector<16x384xf32>
    %2 = tpu.matmul %0, %1, %cst {dimension_numbers = #tpu.dot_dimension_numbers<[1], [0], [0], [1], [0, 0, 1, 1], [], []>} : vector<16x32xf32>, vector<32x384xf32>, vector<16x384xf32> -> vector<16x384xf32>
    %c0_3 = arith.constant 0 : index
    %c0_4 = arith.constant 0 : index
    %3 = vector.load %arg3[%c0_3, %c0_4] : memref<1x384xf32, #tpu.memory_space<vmem>>, vector<1x384xf32>
    %4 = vector.broadcast %3 : vector<1x384xf32> to vector<16x384xf32>
    %5 = arith.addf %2, %4 : vector<16x384xf32>
    %6 = vector.extract_strided_slice %5 {offsets = [0, 0], sizes = [16, 128], strides = [1, 1]} : vector<16x384xf32> to vector<16x128xf32>
    %c0_5 = arith.constant 0 : index
    %c0_6 = arith.constant 0 : index
    %7 = vector.load %arg4[%c0_5, %c0_6] : memref<16x128xf32, #tpu.memory_space<vmem>>, vector<16x128xf32>
    tpu.vector_store %arg4[%c0_5, %c0_6], %6 {strides = array<i32>} : memref<16x128xf32, #tpu.memory_space<vmem>>, vector<16x128xf32>,
    %8 = vector.extract_strided_slice %5 {offsets = [0, 128], sizes = [16, 128], strides = [1, 1]} : vector<16x384xf32> to vector<16x128xf32>
    %c0_7 = arith.constant 0 : index
    %c0_8 = arith.constant 0 : index
    %9 = vector.load %arg5[%c0_7, %c0_8] : memref<16x128xf32, #tpu.memory_space<vmem>>, vector<16x128xf32>
    tpu.vector_store %arg5[%c0_7, %c0_8], %8 {strides = array<i32>} : memref<16x128xf32, #tpu.memory_space<vmem>>, vector<16x128xf32>,
    %10 = vector.extract_strided_slice %5 {offsets = [0, 256], sizes = [16, 128], strides = [1, 1]} : vector<16x384xf32> to vector<16x128xf32>
    %c0_9 = arith.constant 0 : index
    %c0_10 = arith.constant 0 : index
    %11 = vector.load %arg6[%c0_9, %c0_10] : memref<16x128xf32, #tpu.memory_space<vmem>>, vector<16x128xf32>
    tpu.vector_store %arg6[%c0_9, %c0_10], %10 {strides = array<i32>} : memref<16x128xf32, #tpu.memory_space<vmem>>, vector<16x128xf32>,
    return
  }
  func.func @transform_0(%arg0: i32) -> (i32, i32) {
    %c0_i32 = arith.constant 0 : i32
    %c0_i32_0 = arith.constant 0 : i32
    return %arg0, %c0_i32 : i32, i32
  }
  func.func @transform_1(%arg0: i32) -> (i32, i32) {
    %c0_i32 = arith.constant 0 : i32
    %c0_i32_0 = arith.constant 0 : i32
    %c0_i32_1 = arith.constant 0 : i32
    return %c0_i32, %c0_i32_0 : i32, i32
  }
  func.func @transform_2(%arg0: i32) -> (i32, i32) {
    %c0_i32 = arith.constant 0 : i32
    %c0_i32_0 = arith.constant 0 : i32
    %c0_i32_1 = arith.constant 0 : i32
    return %c0_i32, %c0_i32_0 : i32, i32
  }
  func.func @transform_3(%arg0: i32) -> (i32, i32) {
    %c0_i32 = arith.constant 0 : i32
    %c0_i32_0 = arith.constant 0 : i32
    return %arg0, %c0_i32 : i32, i32
  }
  func.func @transform_4(%arg0: i32) -> (i32, i32) {
    %c0_i32 = arith.constant 0 : i32
    %c0_i32_0 = arith.constant 0 : i32
    return %arg0, %c0_i32 : i32, i32
  }
  func.func @transform_5(%arg0: i32) -> (i32, i32) {
    %c0_i32 = arith.constant 0 : i32
    %c0_i32_0 = arith.constant 0 : i32
    return %arg0, %c0_i32 : i32, i32
  }
}

</mosaic_0001>

<llo_original>
// kernel: tpu_custom_call.1
$region0: #{tpu_custom_call.1}
  #allocation0 [shape = 'u32[]', space=smem, size = 0x4, offset = 0x4, fixed_abs, tag = 'smem constant byte address 0x4 - core index']
  #allocation1 [shape = 'u32[144,128]{1,0:T(1,128)}', space=vmem, size = 0x12000, scoped, tag = 'internal scratch']
  %s0 = inlined_call_operand.hbm [shape: f32[16,32], index: 0, kind: input, shape index: {}]
  %s1 = inlined_call_operand.hbm [shape: f32[32,384], index: 1, kind: input, shape index: {}]
  %s2 = inlined_call_operand.vmem [shape: f32[1,384], index: 2, kind: input, shape index: {}]
  %s3 = inlined_call_operand.hbm [shape: f32[16,128], index: 3, kind: output, shape index: {0}]
  %s4 = inlined_call_operand.hbm [shape: f32[16,128], index: 4, kind: output, shape index: {1}]
  %s5 = inlined_call_operand.hbm [shape: f32[16,128], index: 5, kind: output, shape index: {2}]
  %6 = xla_tuple %s3, %s4, %s5
  %s7 = sld [smem:[#allocation0]]
  $region46: #{tpu_custom_call.1} parent=0
    _
  %s9 = ssub.s32 1, %s7
  %s10 = scalar_select 0, %s9, %s7
  $region1: #{tpu_custom_call.1} parent=0
    #allocation2 [shape = 'u8[8192]{0}', space=vmem, size = 0x2000, scoped, tag = 'input window, operand 0, single buffered']
    #allocation3 [shape = 's32[1]{0}', space=sflag, size = 0x4, scoped, tag = 'scoped memory for tpu_custom_call.1']
    #allocation4 [shape = 's32[1]{0}', space=sflag, size = 0x4, scoped, tag = 'scoped memory for tpu_custom_call.1']
    #allocation5 [shape = 'u8[49152]{0}', space=vmem, size = 0xc000, scoped, tag = 'input window, operand 1, single buffered']
    #allocation6 [shape = 's32[1]{0}', space=sflag, size = 0x4, scoped, tag = 'scoped memory for tpu_custom_call.1']
    #allocation7 [shape = 'u8[8192]{0}', space=vmem, size = 0x2000, scoped, tag = 'output window, operand 0, single buffered']
    #allocation8 [shape = 'u8[8192]{0}', space=vmem, size = 0x2000, scoped, tag = 'output window, operand 1, single buffered']
    #allocation9 [shape = 's32[1]{0}', space=sflag, size = 0x4, scoped, tag = 'scoped memory for tpu_custom_call.1']
    #allocation10 [shape = 'u8[8192]{0}', space=vmem, size = 0x2000, scoped, tag = 'output window, operand 2, single buffered']
    %11 = vsyncpa [#allocation3], 0
    %12 = vsyncpa [#allocation6], 0
    %13 = vsyncpa [#allocation4], 0
    %14 = vsyncpa [#allocation9], 0
    // Predicated region
    $region2: #{tpu_custom_call.1} parent=1 // pred_check
      _
    $region3: #{tpu_custom_call.1} parent=1 // pred_check_branch
      %16 = sbr.rel (0) target = $region5
    $region4: #{tpu_custom_call.1} parent=1 // pred_region
      %s18 = ssub.s32 256, 256
      %19 = vsyncadd [#allocation3], %s18
      %s20 = sshll.u32 [#allocation2], 4
      %s21 = int_to_ptr.vmem [resolvable:$true] %s20
      %26 = dma.hbm_to_vmem [thread:$0]  %s0, 256, %s21, [#allocation3], 128, 128, 8
    $region5: #{tpu_custom_call.1} parent=1 // pred_fallthru
      _
    // Predicated region
    $region6: #{tpu_custom_call.1} parent=1 // pred_check
      _
    $region7: #{tpu_custom_call.1} parent=1 // pred_check_branch
      %28 = sbr.rel (0) target = $region9
    $region8: #{tpu_custom_call.1} parent=1 // pred_region
      %s30 = ssub.s32 1536, 1536
      %31 = vsyncadd [#allocation6], %s30
      %s32 = sshll.u32 [#allocation5], 4
      %s33 = int_to_ptr.vmem [resolvable:$true] %s32
      %38 = dma.hbm_to_vmem [thread:$0]  %s1, 1536, %s33, [#allocation6], 384, 384, 24
    $region9: #{tpu_custom_call.1} parent=1 // pred_fallthru
      _
    // Predicated region
    $region10: #{tpu_custom_call.1} parent=1 // pred_check
      _
    $region11: #{tpu_custom_call.1} parent=1 // pred_check_branch
      %40 = sbr.rel (0) target = $region13
    $region12: #{tpu_custom_call.1} parent=1 // pred_region
      _
    $region13: #{tpu_custom_call.1} parent=1 // pred_fallthru
      _
    // Predicated region
    $region14: #{tpu_custom_call.1} parent=1 // pred_check
      _
    $region15: #{tpu_custom_call.1} parent=1 // pred_check_branch
      %42 = sbr.rel (0) target = $region17
    $region16: #{tpu_custom_call.1} parent=1 // pred_region
      %43 = dma.done [#allocation3], 256
    $region17: #{tpu_custom_call.1} parent=1 // pred_fallthru
      _
    // Predicated region
    $region18: #{tpu_custom_call.1} parent=1 // pred_check
      _
    $region19: #{tpu_custom_call.1} parent=1 // pred_check_branch
      %45 = sbr.rel (0) target = $region21
    $region20: #{tpu_custom_call.1} parent=1 // pred_region
      %46 = dma.done [#allocation6], 1536
    $region21: #{tpu_custom_call.1} parent=1 // pred_fallthru
      _
    %v47 = vld [vmem:[#allocation2] sm:$0xff]
    %v48 = vld [vmem:[#allocation2 + $0x8] sm:$0xff]
    %v49 = vld [vmem:[#allocation5] sm:$0xff]
    %v50 = vld [vmem:[#allocation5 + $0x8] sm:$0xff]
    %v51 = vld [vmem:[#allocation5 + $0x10] sm:$0xff]
    %v52 = vld [vmem:[#allocation5 + $0x18] sm:$0xff]
    %v53 = vld [vmem:[#allocation5 + $0x20] sm:$0xff]
    %v54 = vld [vmem:[#allocation5 + $0x28] sm:$0xff]
    %v55 = vld [vmem:[#allocation5 + $0x30] sm:$0xff]
    %v56 = vld [vmem:[#allocation5 + $0x38] sm:$0xff]
    %v57 = vld [vmem:[#allocation5 + $0x40] sm:$0xff]
    %v58 = vld [vmem:[#allocation5 + $0x48] sm:$0xff]
    %v59 = vld [vmem:[#allocation5 + $0x50] sm:$0xff]
    %v60 = vld [vmem:[#allocation5 + $0x58] sm:$0xff]
    %v61 = vld [vmem:[%s2] sm:$0x7]
    %v63 = vlaneseq
    %v64 = vshrl.u32 %v63, 7
    %v65 = vsub.s32 0, %v64
    %v66 = vrot.slane %v61, %v65
    %v67 = vlaneseq
    %v68 = vshrl.u32 %v67, 7
    %v69 = vsub.s32 1, %v68
    %v70 = vrot.slane %v61, %v69
    %v71 = vlaneseq
    %v72 = vshrl.u32 %v71, 7
    %v73 = vsub.s32 2, %v72
    %v74 = vrot.slane %v61, %v73
    %vm78 = vcmask 261120
    %v80 = vsel %vm78, %v47, 0
    %v83 = vsel %vm78, %v48, 0
    %85 = vmatprep.subr.mxu0 %v50
    %86 = vmatpush1.msra.mxu0 %v49
    %87 = vmatprep.subr.mxu0 %v53
    %88 = vmatpush1.msra.mxu0 %v52
    %89 = vmatprep.subr.mxu0 %v56
    %90 = vmatpush1.msra.mxu0 %v55
    %91 = vmatprep.subr.mxu0 %v59
    %92 = vmatpush1.msra.mxu0 %v58
    %93 = vmatprep.subr.mxu0 0.0
    %94 = vmatpush1.msra.mxu0 0.0
    %95 = vmatprep.subr.mxu0 0.0
    %96 = vmatpush1.msra.mxu0 0.0
    %97 = vmatprep.subr.mxu0 0.0
    %98 = vmatpush1.msra.mxu0 0.0
    %99 = vmatprep.subr.mxu0 0.0
    %100 = vmatpush1.msra.mxu0 0.0
    %101 = vmatprep.subr.mxu0 0.0
    %102 = vmatpush1.msra.mxu0 0.0
    %103 = vmatprep.subr.mxu0 0.0
    %104 = vmatpush1.msra.mxu0 0.0
    %105 = vmatprep.subr.mxu0 0.0
    %106 = vmatpush1.msra.mxu0 0.0
    %107 = vmatprep.subr.mxu0 0.0
    %108 = vmatpush1.msra.mxu0 0.0
    %109 = vmatprep.subr.mxu0 0.0
    %110 = vmatpush1.msra.mxu0 0.0
    %111 = vmatprep.subr.mxu0 0.0
    %112 = vmatpush1.msra.mxu0 0.0
    %113 = vmatprep.subr.mxu0 0.0
    %114 = vmatpush1.msra.mxu0 0.0
    %115 = vmatprep.subr.mxu0 0.0
    %116 = vmatpush1.msra.mxu0 0.0
    %117 = vmatprep.subr.mxu0 0.0
    %118 = vmatpush1.msra.mxu0 0.0
    %119 = vmatprep.subr.mxu0 0.0
    %120 = vmatpush1.msra.mxu0 0.0
    %121 = vmatprep.subr.mxu0 0.0
    %122 = vmatpush1.msra.mxu0 0.0
    %123 = vmatprep.subr.mxu0 0.0
    %124 = vmatpush1.msra.mxu0 0.0
    %125 = vmatprep.subr.mxu0 0.0
    %126 = vmatpush1.msra.mxu0 0.0
    %127 = vmatprep.subr.mxu0 0.0
    %128 = vmatpush1.msra.mxu0 0.0
    %129 = vmatprep.subr.mxu0 0.0
    %130 = vmatpush1.msra.mxu0 0.0
    %131 = vmatprep.subr.mxu0 0.0
    %132 = vmatpush1.msra.mxu0 0.0
    %133 = vmatprep.subr.mxu0 0.0
    %134 = vmatpush1.msra.mxu0 0.0
    %135 = vmatprep.subr.mxu0 0.0
    %136 = vmatpush1.msra.mxu0 0.0
    %137 = vmatprep.subr.mxu0 0.0
    %138 = vmatpush1.msra.mxu0 0.0
    %139 = vmatprep.subr.mxu0 0.0
    %140 = vmatpush1.msra.mxu0 0.0
    %141 = vmatprep.subr.mxu0 0.0
    %142 = vmatpush1.msra.mxu0 0.0
    %143 = vmatprep.subr.mxu0 0.0
    %144 = vmatpush1.msra.mxu0 0.0
    %145 = vmatprep.subr.mxu0 0.0
    %146 = vmatpush1.msra.mxu0 0.0
    %147 = vmatprep.subr.mxu0 0.0
    %148 = vmatpush1.msra.mxu0 0.0
    %149 = vmatprep.mubr.f32.mxu0 0.0
    %150 = vmatmul.mubr.f32.gmra.mrb[0].mxu0 %v80
    %v151 = vpop.f32.mrb[0].mxu0
    %v152 = vadd.f32 %v66, %v151
    %v153 = vpop.f32.mrb[0].mxu0
    %v154 = vadd.f32 %v70, %v153
    %155 = vmatprep.mubr.f32.mxu0 0.0
    %156 = vmatmul.mubr.f32.gmra.mrb[0].mxu0 %v83
    %v157 = vpop.f32.mrb[0].mxu0
    %v158 = vadd.f32 %v66, %v157
    %v159 = vpop.f32.mrb[0].mxu0
    %v160 = vadd.f32 %v70, %v159
    %161 = vdwg.mxu0
    %162 = vmatprep.subr.mxu0 0.0
    %163 = vmatpush1.msra.mxu0 %v51
    %164 = vmatprep.subr.mxu0 0.0
    %165 = vmatpush1.msra.mxu0 %v54
    %166 = vmatprep.subr.mxu0 0.0
    %167 = vmatpush1.msra.mxu0 %v57
    %168 = vmatprep.subr.mxu0 0.0
    %169 = vmatpush1.msra.mxu0 %v60
    %170 = vmatprep.subr.mxu0 0.0
    %171 = vmatpush1.msra.mxu0 0.0
    %172 = vmatprep.subr.mxu0 0.0
    %173 = vmatpush1.msra.mxu0 0.0
    %174 = vmatprep.subr.mxu0 0.0
    %175 = vmatpush1.msra.mxu0 0.0
    %176 = vmatprep.subr.mxu0 0.0
    %177 = vmatpush1.msra.mxu0 0.0
    %178 = vmatprep.subr.mxu0 0.0
    %179 = vmatpush1.msra.mxu0 0.0
    %180 = vmatprep.subr.mxu0 0.0
    %181 = vmatpush1.msra.mxu0 0.0
    %182 = vmatprep.subr.mxu0 0.0
    %183 = vmatpush1.msra.mxu0 0.0
    %184 = vmatprep.subr.mxu0 0.0
    %185 = vmatpush1.msra.mxu0 0.0
    %186 = vmatprep.subr.mxu0 0.0
    %187 = vmatpush1.msra.mxu0 0.0
    %188 = vmatprep.subr.mxu0 0.0
    %189 = vmatpush1.msra.mxu0 0.0
    %190 = vmatprep.subr.mxu0 0.0
    %191 = vmatpush1.msra.mxu0 0.0
    %192 = vmatprep.subr.mxu0 0.0
    %193 = vmatpush1.msra.mxu0 0.0
    %194 = vmatprep.subr.mxu0 0.0
    %195 = vmatpush1.msra.mxu0 0.0
    %196 = vmatprep.subr.mxu0 0.0
    %197 = vmatpush1.msra.mxu0 0.0
    %198 = vmatprep.subr.mxu0 0.0
    %199 = vmatpush1.msra.mxu0 0.0
    %200 = vmatprep.subr.mxu0 0.0
    %201 = vmatpush1.msra.mxu0 0.0
    %202 = vmatprep.subr.mxu0 0.0
    %203 = vmatpush1.msra.mxu0 0.0
    %204 = vmatprep.subr.mxu0 0.0
    %205 = vmatpush1.msra.mxu0 0.0
    %206 = vmatprep.subr.mxu0 0.0
    %207 = vmatpush1.msra.mxu0 0.0
    %208 = vmatprep.subr.mxu0 0.0
    %209 = vmatpush1.msra.mxu0 0.0
    %210 = vmatprep.subr.mxu0 0.0
    %211 = vmatpush1.msra.mxu0 0.0
    %212 = vmatprep.subr.mxu0 0.0
    %213 = vmatpush1.msra.mxu0 0.0
    %214 = vmatprep.subr.mxu0 0.0
    %215 = vmatpush1.msra.mxu0 0.0
    %216 = vmatprep.subr.mxu0 0.0
    %217 = vmatpush1.msra.mxu0 0.0
    %218 = vmatprep.subr.mxu0 0.0
    %219 = vmatpush1.msra.mxu0 0.0
    %220 = vmatprep.subr.mxu0 0.0
    %221 = vmatpush1.msra.mxu0 0.0
    %222 = vmatprep.subr.mxu0 0.0
    %223 = vmatpush1.msra.mxu0 0.0
    %224 = vmatprep.subr.mxu0 0.0
    %225 = vmatpush1.msra.mxu0 0.0
    %226 = vmatprep.mubr.f32.mxu0 0.0
    %227 = vmatmul.mubr.f32.gmra.mrb[0].mxu0 %v80
    %v228 = vpop.f32.mrb[0].mxu0
    %v229 = vadd.f32 %v74, %v228
    %v230 = vpop.f32.mrb[0].mxu0
    %231 = vmatprep.mubr.f32.mxu0 0.0
    %232 = vmatmul.mubr.f32.gmra.mrb[0].mxu0 %v83
    %v233 = vpop.f32.mrb[0].mxu0
    %v234 = vadd.f32 %v74, %v233
    %v235 = vpop.f32.mrb[0].mxu0
    %236 = vdwg.mxu0
    %237 = vst [vmem:[#allocation7] sm:$0xff] %v152
    %238 = vst [vmem:[#allocation7 + $0x8] sm:$0xff] %v158
    %239 = vst [vmem:[#allocation8] sm:$0xff] %v154
    %240 = vst [vmem:[#allocation8 + $0x8] sm:$0xff] %v160
    %241 = vst [vmem:[#allocation10] sm:$0xff] %v229
    %242 = vst [vmem:[#allocation10 + $0x8] sm:$0xff] %v234
    // Predicated region
    $region22: #{tpu_custom_call.1} parent=1 // pred_check
      _
    $region23: #{tpu_custom_call.1} parent=1 // pred_check_branch
      %244 = sbr.rel (0) target = $region25
    $region24: #{tpu_custom_call.1} parent=1 // pred_region
      %s246 = ssub.s32 256, 256
      %247 = vsyncadd [#allocation4], %s246
      %s248 = sshll.u32 [#allocation7], 4
      %s249 = int_to_ptr.vmem [resolvable:$true] %s248
      %254 = dma.vmem_to_hbm [thread:$0]  %s249, 256, %s3, [#allocation4], 128, 128, 8
    $region25: #{tpu_custom_call.1} parent=1 // pred_fallthru
      _
    // Predicated region
    $region26: #{tpu_custom_call.1} parent=1 // pred_check
      _
    $region27: #{tpu_custom_call.1} parent=1 // pred_check_branch
      %256 = sbr.rel (0) target = $region29
    $region28: #{tpu_custom_call.1} parent=1 // pred_region
      %s258 = ssub.s32 256, 256
      %259 = vsyncadd [#allocation9], %s258
      %s260 = sshll.u32 [#allocation8], 4
      %s261 = int_to_ptr.vmem [resolvable:$true] %s260
      %266 = dma.vmem_to_hbm [thread:$0]  %s261, 256, %s4, [#allocation9], 128, 128, 8
    $region29: #{tpu_custom_call.1} parent=1 // pred_fallthru
      _
    // Predicated region
    $region30: #{tpu_custom_call.1} parent=1 // pred_check
      _
    $region31: #{tpu_custom_call.1} parent=1 // pred_check_branch
      %268 = sbr.rel (0) target = $region33
    $region32: #{tpu_custom_call.1} parent=1 // pred_region
      %s270 = ssub.s32 256, 256
      %271 = vsyncadd [#allocation9], %s270
      %s272 = sshll.u32 [#allocation10], 4
      %s273 = int_to_ptr.vmem [resolvable:$true] %s272
      %278 = dma.vmem_to_hbm [thread:$0]  %s273, 256, %s5, [#allocation9], 128, 128, 8
    $region33: #{tpu_custom_call.1} parent=1 // pred_fallthru
      _
    // Predicated region
    $region34: #{tpu_custom_call.1} parent=1 // pred_check
      _
    $region35: #{tpu_custom_call.1} parent=1 // pred_check_branch
      %280 = sbr.rel (0) target = $region37
    $region36: #{tpu_custom_call.1} parent=1 // pred_region
      %281 = dma.done [#allocation4], 256
    $region37: #{tpu_custom_call.1} parent=1 // pred_fallthru
      _
    // Predicated region
    $region38: #{tpu_custom_call.1} parent=1 // pred_check
      _
    $region39: #{tpu_custom_call.1} parent=1 // pred_check_branch
      %283 = sbr.rel (0) target = $region41
    $region40: #{tpu_custom_call.1} parent=1 // pred_region
      %284 = dma.done [#allocation9], 256
    $region41: #{tpu_custom_call.1} parent=1 // pred_fallthru
      _
    // Predicated region
    $region42: #{tpu_custom_call.1} parent=1 // pred_check
      _
    $region43: #{tpu_custom_call.1} parent=1 // pred_check_branch
      %286 = sbr.rel (0) target = $region45
    $region44: #{tpu_custom_call.1} parent=1 // pred_region
      %287 = dma.done [#allocation9], 256
    $region45: #{tpu_custom_call.1} parent=1 // pred_fallthru
      _
    %288 = vsyncpa [#allocation3], 1
    %289 = vsyncpa [#allocation6], 1
    %290 = vsyncpa [#allocation4], 1
    %291 = vsyncpa [#allocation9], 1

</llo_original>
